<compile_context>
chip_gen: v5e
topology: v5e:2x2
jax: 0.10.0
libtpu: 0.0.40
codegen_flags: <defaults>
</compile_context>

<pallas_src>
import functools

import jax
import jax.numpy as jnp
from jax import lax
from jax.experimental import pallas as pl
from jax.experimental.pallas import tpu as pltpu

LANE = 128
SUBLANES = 8


def _round_up(x, m):
    return ((x + m - 1) // m) * m


def _sample_kernel(bits_ref, out_ref, *, n_items, k, base, idx_bits, n_rows):
    """Pick k distinct item ids from [base, base + n_items) uniformly at random.

    bits_ref : VMEM (n_rows, 128) int32  -- non-negative random bits, one per slot
    out_ref  : SMEM (k,) int32           -- sampled ids
    """
    int32_min = jnp.iinfo(jnp.int32).min
    idx_mask = (1 << idx_bits) - 1
    high_mask = 0x7FFFFFFF & ~idx_mask  # keep 31 - idx_bits random high bits

    row = lax.broadcasted_iota(jnp.int32, (n_rows, LANE), 0)
    lane = lax.broadcasted_iota(jnp.int32, (n_rows, LANE), 1)
    item = row * LANE + lane

    # Packed key: high bits random, low bits = item index. All valid keys >= 0.
    keys = (bits_ref[...] & jnp.int32(high_mask)) | item
    # Padded slots can never win.
    keys = jnp.where(item < n_items, keys, jnp.int32(int32_min))

    def body(i, keys):
        kmax = jnp.max(keys)                      # single fused max+argmax
        idx = kmax & jnp.int32(idx_mask)          # winning item index
        out_ref[i] = jnp.int32(base) + idx        # scalar write to SMEM
        # Remove the chosen item so it cannot be drawn again (no replacement).
        return jnp.where(item == idx, jnp.int32(int32_min), keys)

    unroll = True if k <= 64 else 8
    lax.fori_loop(0, k, body, keys, unroll=unroll)


def random_model_predict(dims, interactions, rng_key):
    """Pallas equivalent of RandomModel(dims).predict(interactions)."""
    base, hi = int(dims[0]), int(dims[1])
    n_items = hi - base
    k = int(interactions.shape[0]) - 1
    assert 0 < k <= n_items, "need 0 < k <= number of items"

    # Dense 2D layout: rows multiple of 8, 128 lanes, covering all items.
    n_rows = max(SUBLANES, _round_up(pl.cdiv(n_items, LANE), SUBLANES))
    n_pad = n_rows * LANE
    idx_bits = max(1, (n_pad - 1).bit_length())
    # Keep >= 15 random high bits so the packed-key trick stays uniform.
    # TODO(synk): for very large catalogs (idx_bits > 16) use a blocked /
    #             tournament selection instead of the packed-key full-array max.
    assert idx_bits <= 16, "catalog too large for packed-key selection"

    # Host-side random bits (hardware PRNG is TPU-only and cannot be interpreted).
    bits = jax.random.randint(
        rng_key, (n_rows, LANE), minval=0,
        maxval=jnp.iinfo(jnp.int32).max, dtype=jnp.int32)

    kernel = functools.partial(
        _sample_kernel, n_items=n_items, k=k, base=base,
        idx_bits=idx_bits, n_rows=n_rows)

    ids = pl.pallas_call(
        kernel,
        out_shape=jax.ShapeDtypeStruct((k,), jnp.int32),
        in_specs=[pl.BlockSpec(memory_space=pltpu.MemorySpace.VMEM)],
        out_specs=pl.BlockSpec(memory_space=pltpu.MemorySpace.SMEM),
    )(bits)
    return ids.astype(jnp.float32)


if __name__ == "__main__":
    key = jax.random.PRNGKey(0)
    k_inter, k_sample = jax.random.split(key)

    # Module config: all_items = range(dims[0], dims[1])
    dims = (0, 64)
    # `interactions` content is irrelevant in the reference; only its length
    # matters (k = len(interactions) - 1).
    interactions = jax.random.randint(k_inter, (8,), minval=dims[0], maxval=dims[1])

    sampled = random_model_predict(dims, interactions, k_sample)
    sampled = jax.block_until_ready(sampled)

    # Validate semantics: k distinct float ids, all inside [dims[0], dims[1]).
    k = interactions.shape[0] - 1
    vals = [int(v) for v in jax.device_get(sampled)]
    assert sampled.dtype == jnp.float32
    assert sampled.shape == (k,)
    assert len(set(vals)) == k, "sampled items must be distinct"
    assert all(dims[0] <= v < dims[1] for v in vals), "sampled items out of range"

    print("KERNEL_OK")
</pallas_src>

<mosaic_0001>
module attributes {stable_mosaic.version = 11 : i64} {
  func.func @_sample_kernel(%arg0: memref<8x128xi32, #tpu.memory_space<vmem>>, %arg1: memref<7xi32, #tpu.memory_space<smem>>) attributes {dimension_semantics = [], scalar_prefetch = 0 : i64, scratch_operands = 0 : i64, tpu.core_type = #tpu.core_type<tc>} {
    %0 = tpu.iota {dimensions = array<i32: 0>} : vector<8x128xi32>
    %1 = tpu.iota {dimensions = array<i32: 1>} : vector<8x128xi32>
    %c128_i32 = arith.constant 128 : i32
    %2 = vector.broadcast %c128_i32 : i32 to vector<8x128xi32>
    %3 = arith.muli %0, %2 : vector<8x128xi32>
    %4 = arith.addi %3, %1 : vector<8x128xi32>
    %c0 = arith.constant 0 : index
    %c0_0 = arith.constant 0 : index
    %5 = vector.load %arg0[%c0, %c0_0] : memref<8x128xi32, #tpu.memory_space<vmem>>, vector<8x128xi32>
    %c2147482624_i32 = arith.constant 2147482624 : i32
    %6 = vector.broadcast %c2147482624_i32 : i32 to vector<8x128xi32>
    %7 = arith.andi %5, %6 : vector<8x128xi32>
    %8 = arith.ori %7, %4 : vector<8x128xi32>
    %c64_i32 = arith.constant 64 : i32
    %9 = vector.broadcast %c64_i32 : i32 to vector<8x128xi32>
    %10 = arith.cmpi slt, %4, %9 : vector<8x128xi32>
    %c-2147483648_i32 = arith.constant -2147483648 : i32
    %11 = vector.broadcast %c-2147483648_i32 : i32 to vector<8x128xi32>
    %12 = arith.select %10, %8, %11 : vector<8x128xi1>, vector<8x128xi32>
    %c0_i32 = arith.constant 0 : i32
    %13 = vector.shape_cast %12 : vector<8x128xi32> to vector<1x8x128xi32>
    %cst = arith.constant dense<-2147483648> : vector<1xi32>
    %14 = vector.multi_reduction <maxsi>, %13, %cst [1, 2] : vector<1x8x128xi32> to vector<1xi32>
    %15 = vector.shape_cast %14 : vector<1xi32> to vector<1x1x1xi32>
    %16 = vector.extract %15[0, 0, 0] : i32 from vector<1x1x1xi32>
    %c1023_i32 = arith.constant 1023 : i32
    %17 = arith.andi %16, %c1023_i32 : i32
    %c0_i32_1 = arith.constant 0 : i32
    %18 = arith.addi %c0_i32_1, %17 : i32
    %19 = arith.index_cast %c0_i32 : i32 to index
    %20 = memref.load %arg1[%19] : memref<7xi32, #tpu.memory_space<smem>>
    memref.store %18, %arg1[%19] : memref<7xi32, #tpu.memory_space<smem>>
    %21 = vector.broadcast %17 : i32 to vector<8x128xi32>
    %22 = arith.cmpi eq, %4, %21 : vector<8x128xi32>
    %c-2147483648_i32_2 = arith.constant -2147483648 : i32
    %23 = vector.broadcast %c-2147483648_i32_2 : i32 to vector<8x128xi32>
    %24 = arith.select %22, %23, %12 : vector<8x128xi1>, vector<8x128xi32>
    %c1_i32 = arith.constant 1 : i32
    %25 = vector.shape_cast %24 : vector<8x128xi32> to vector<1x8x128xi32>
    %cst_3 = arith.constant dense<-2147483648> : vector<1xi32>
    %26 = vector.multi_reduction <maxsi>, %25, %cst_3 [1, 2] : vector<1x8x128xi32> to vector<1xi32>
    %27 = vector.shape_cast %26 : vector<1xi32> to vector<1x1x1xi32>
    %28 = vector.extract %27[0, 0, 0] : i32 from vector<1x1x1xi32>
    %c1023_i32_4 = arith.constant 1023 : i32
    %29 = arith.andi %28, %c1023_i32_4 : i32
    %c0_i32_5 = arith.constant 0 : i32
    %30 = arith.addi %c0_i32_5, %29 : i32
    %31 = arith.index_cast %c1_i32 : i32 to index
    %32 = memref.load %arg1[%31] : memref<7xi32, #tpu.memory_space<smem>>
    memref.store %30, %arg1[%31] : memref<7xi32, #tpu.memory_space<smem>>
    %33 = vector.broadcast %29 : i32 to vector<8x128xi32>
    %34 = arith.cmpi eq, %4, %33 : vector<8x128xi32>
    %c-2147483648_i32_6 = arith.constant -2147483648 : i32
    %35 = vector.broadcast %c-2147483648_i32_6 : i32 to vector<8x128xi32>
    %36 = arith.select %34, %35, %24 : vector<8x128xi1>, vector<8x128xi32>
    %c2_i32 = arith.constant 2 : i32
    %37 = vector.shape_cast %36 : vector<8x128xi32> to vector<1x8x128xi32>
    %cst_7 = arith.constant dense<-2147483648> : vector<1xi32>
    %38 = vector.multi_reduction <maxsi>, %37, %cst_7 [1, 2] : vector<1x8x128xi32> to vector<1xi32>
    %39 = vector.shape_cast %38 : vector<1xi32> to vector<1x1x1xi32>
    %40 = vector.extract %39[0, 0, 0] : i32 from vector<1x1x1xi32>
    %c1023_i32_8 = arith.constant 1023 : i32
    %41 = arith.andi %40, %c1023_i32_8 : i32
    %c0_i32_9 = arith.constant 0 : i32
    %42 = arith.addi %c0_i32_9, %41 : i32
    %43 = arith.index_cast %c2_i32 : i32 to index
    %44 = memref.load %arg1[%43] : memref<7xi32, #tpu.memory_space<smem>>
    memref.store %42, %arg1[%43] : memref<7xi32, #tpu.memory_space<smem>>
    %45 = vector.broadcast %41 : i32 to vector<8x128xi32>
    %46 = arith.cmpi eq, %4, %45 : vector<8x128xi32>
    %c-2147483648_i32_10 = arith.constant -2147483648 : i32
    %47 = vector.broadcast %c-2147483648_i32_10 : i32 to vector<8x128xi32>
    %48 = arith.select %46, %47, %36 : vector<8x128xi1>, vector<8x128xi32>
    %c3_i32 = arith.constant 3 : i32
    %49 = vector.shape_cast %48 : vector<8x128xi32> to vector<1x8x128xi32>
    %cst_11 = arith.constant dense<-2147483648> : vector<1xi32>
    %50 = vector.multi_reduction <maxsi>, %49, %cst_11 [1, 2] : vector<1x8x128xi32> to vector<1xi32>
    %51 = vector.shape_cast %50 : vector<1xi32> to vector<1x1x1xi32>
    %52 = vector.extract %51[0, 0, 0] : i32 from vector<1x1x1xi32>
    %c1023_i32_12 = arith.constant 1023 : i32
    %53 = arith.andi %52, %c1023_i32_12 : i32
    %c0_i32_13 = arith.constant 0 : i32
    %54 = arith.addi %c0_i32_13, %53 : i32
    %55 = arith.index_cast %c3_i32 : i32 to index
    %56 = memref.load %arg1[%55] : memref<7xi32, #tpu.memory_space<smem>>
    memref.store %54, %arg1[%55] : memref<7xi32, #tpu.memory_space<smem>>
    %57 = vector.broadcast %53 : i32 to vector<8x128xi32>
    %58 = arith.cmpi eq, %4, %57 : vector<8x128xi32>
    %c-2147483648_i32_14 = arith.constant -2147483648 : i32
    %59 = vector.broadcast %c-2147483648_i32_14 : i32 to vector<8x128xi32>
    %60 = arith.select %58, %59, %48 : vector<8x128xi1>, vector<8x128xi32>
    %c4_i32 = arith.constant 4 : i32
    %61 = vector.shape_cast %60 : vector<8x128xi32> to vector<1x8x128xi32>
    %cst_15 = arith.constant dense<-2147483648> : vector<1xi32>
    %62 = vector.multi_reduction <maxsi>, %61, %cst_15 [1, 2] : vector<1x8x128xi32> to vector<1xi32>
    %63 = vector.shape_cast %62 : vector<1xi32> to vector<1x1x1xi32>
    %64 = vector.extract %63[0, 0, 0] : i32 from vector<1x1x1xi32>
    %c1023_i32_16 = arith.constant 1023 : i32
    %65 = arith.andi %64, %c1023_i32_16 : i32
    %c0_i32_17 = arith.constant 0 : i32
    %66 = arith.addi %c0_i32_17, %65 : i32
    %67 = arith.index_cast %c4_i32 : i32 to index
    %68 = memref.load %arg1[%67] : memref<7xi32, #tpu.memory_space<smem>>
    memref.store %66, %arg1[%67] : memref<7xi32, #tpu.memory_space<smem>>
    %69 = vector.broadcast %65 : i32 to vector<8x128xi32>
    %70 = arith.cmpi eq, %4, %69 : vector<8x128xi32>
    %c-2147483648_i32_18 = arith.constant -2147483648 : i32
    %71 = vector.broadcast %c-2147483648_i32_18 : i32 to vector<8x128xi32>
    %72 = arith.select %70, %71, %60 : vector<8x128xi1>, vector<8x128xi32>
    %c5_i32 = arith.constant 5 : i32
    %73 = vector.shape_cast %72 : vector<8x128xi32> to vector<1x8x128xi32>
    %cst_19 = arith.constant dense<-2147483648> : vector<1xi32>
    %74 = vector.multi_reduction <maxsi>, %73, %cst_19 [1, 2] : vector<1x8x128xi32> to vector<1xi32>
    %75 = vector.shape_cast %74 : vector<1xi32> to vector<1x1x1xi32>
    %76 = vector.extract %75[0, 0, 0] : i32 from vector<1x1x1xi32>
    %c1023_i32_20 = arith.constant 1023 : i32
    %77 = arith.andi %76, %c1023_i32_20 : i32
    %c0_i32_21 = arith.constant 0 : i32
    %78 = arith.addi %c0_i32_21, %77 : i32
    %79 = arith.index_cast %c5_i32 : i32 to index
    %80 = memref.load %arg1[%79] : memref<7xi32, #tpu.memory_space<smem>>
    memref.store %78, %arg1[%79] : memref<7xi32, #tpu.memory_space<smem>>
    %81 = vector.broadcast %77 : i32 to vector<8x128xi32>
    %82 = arith.cmpi eq, %4, %81 : vector<8x128xi32>
    %c-2147483648_i32_22 = arith.constant -2147483648 : i32
    %83 = vector.broadcast %c-2147483648_i32_22 : i32 to vector<8x128xi32>
    %84 = arith.select %82, %83, %72 : vector<8x128xi1>, vector<8x128xi32>
    %c6_i32 = arith.constant 6 : i32
    %85 = vector.shape_cast %84 : vector<8x128xi32> to vector<1x8x128xi32>
    %cst_23 = arith.constant dense<-2147483648> : vector<1xi32>
    %86 = vector.multi_reduction <maxsi>, %85, %cst_23 [1, 2] : vector<1x8x128xi32> to vector<1xi32>
    %87 = vector.shape_cast %86 : vector<1xi32> to vector<1x1x1xi32>
    %88 = vector.extract %87[0, 0, 0] : i32 from vector<1x1x1xi32>
    %c1023_i32_24 = arith.constant 1023 : i32
    %89 = arith.andi %88, %c1023_i32_24 : i32
    %c0_i32_25 = arith.constant 0 : i32
    %90 = arith.addi %c0_i32_25, %89 : i32
    %91 = arith.index_cast %c6_i32 : i32 to index
    %92 = memref.load %arg1[%91] : memref<7xi32, #tpu.memory_space<smem>>
    memref.store %90, %arg1[%91] : memref<7xi32, #tpu.memory_space<smem>>
    %93 = vector.broadcast %89 : i32 to vector<8x128xi32>
    %94 = arith.cmpi eq, %4, %93 : vector<8x128xi32>
    %c-2147483648_i32_26 = arith.constant -2147483648 : i32
    %95 = vector.broadcast %c-2147483648_i32_26 : i32 to vector<8x128xi32>
    %96 = arith.select %94, %95, %84 : vector<8x128xi1>, vector<8x128xi32>
    %c7_i32 = arith.constant 7 : i32
    return
  }
}

</mosaic_0001>

<llo_original>
// kernel: tpu_custom_call.1
$region0: #{tpu_custom_call.1}
  #allocation0 [shape = 'u32[]', space=smem, size = 0x4, offset = 0x4, fixed_abs, tag = 'smem constant byte address 0x4 - core index']
  #allocation1 [shape = 'u32[72,128]{1,0:T(1,128)}', space=vmem, size = 0x9000, scoped, tag = 'internal scratch']
  %s0 = inlined_call_operand.hbm [shape: s32[8,128], index: 0, kind: input, shape index: {}]
  %s1 = inlined_call_operand.hbm [shape: s32[7], index: 1, kind: output, shape index: {}]
  %s2 = sld [smem:[#allocation0]]
  $region18: #{tpu_custom_call.1} parent=0
    _
  %s4 = ssub.s32 1, %s2
  %s5 = scalar_select 0, %s4, %s2
  $region1: #{tpu_custom_call.1} parent=0
    #allocation2 [shape = 'u8[4096]{0}', space=vmem, size = 0x1000, scoped, tag = 'input window, operand 0, single buffered']
    #allocation3 [shape = 's32[1]{0}', space=sflag, size = 0x4, scoped, tag = 'scoped memory for tpu_custom_call.1']
    #allocation4 [shape = 's32[1]{0}', space=sflag, size = 0x4, scoped, tag = 'scoped memory for tpu_custom_call.1']
    #allocation5 [shape = 'u8[512]{0}', space=smem, size = 0x200, scoped, tag = 'output window, operand 0, single buffered']
    %6 = vsyncpa [#allocation3], 0
    %7 = vsyncpa [#allocation4], 0
    // Predicated region
    $region2: #{tpu_custom_call.1} parent=1 // pred_check
      _
    $region3: #{tpu_custom_call.1} parent=1 // pred_check_branch
      %9 = sbr.rel (0) target = $region5
    $region4: #{tpu_custom_call.1} parent=1 // pred_region
      %11 = vsyncadd [#allocation3], 0
      %s13 = sshll.u32 %s0, 4
      %s14 = int_to_ptr.hbm [resolvable:$true] %s13
      %s15 = sshll.u32 [#allocation2], 4
      %s16 = int_to_ptr.vmem [resolvable:$true] %s15
      %18 = dma.hbm_to_vmem [thread:$0]  %s14, 128, %s16, [#allocation3]
    $region5: #{tpu_custom_call.1} parent=1 // pred_fallthru
      _
    // Predicated region
    $region6: #{tpu_custom_call.1} parent=1 // pred_check
      _
    $region7: #{tpu_custom_call.1} parent=1 // pred_check_branch
      %20 = sbr.rel (0) target = $region9
    $region8: #{tpu_custom_call.1} parent=1 // pred_region
      %22 = dma.done [#allocation3], 128
    $region9: #{tpu_custom_call.1} parent=1 // pred_fallthru
      _
    %v23 = vlaneseq
    %v24 = vshrl.u32 %v23, 7
    %v25 = vlaneseq
    %v26 = vand.u32 %v25, 127
    %v27 = vmul.u32 %v24, 128
    %v28 = vadd.s32 %v27, %v26
    %v29 = vld [vmem:[#allocation2] sm:$0xff]
    %v30 = vand.u32 %v29, 2147482624
    %v31 = vor.u32 %v30, %v28
    %vm32 = vcmp.lt.s32.totalorder %v28, 64
    %v33 = vsel %vm32, %v31, 2147483648
    %v34 = vand.u32 %v33, 65535
    %v35 = vshra.s32 %v33, 16
    %v36 = vcvt.s32.f32 %v34
    %v37 = vcvt.s32.f32 %v35
    %38 = vmax.xlane.f32.xlu0 %v37
    %v39 = vpop.xlane.xlu0 %38
    %vm40 = vcmp.eq.f32.partialorder %v37, %v39
    %v41 = vsel %vm40, %v36, -inf
    %42 = vmax.xlane.f32.xlu0 %v41
    %v43 = vpop.xlane.xlu0 %42
    %v44 = vcvt.f32.s32 %v43
    %v45 = vcvt.f32.s32 %v39
    %v46 = vshll.u32 %v45, 16
    %v47 = vadd.s32 %v46, %v44
    %v48 = vrot.slane %v47, 4
    %vm49 = vcmp.gt.s32.totalorder %v47, %v48
    %v50 = vsel %vm49, %v47, %v48
    %v51 = vrot.slane %v50, 2
    %vm52 = vcmp.gt.s32.totalorder %v50, %v51
    %v53 = vsel %vm52, %v50, %v51
    %v54 = vrot.slane %v53, 1
    %vm55 = vcmp.gt.s32.totalorder %v53, %v54
    %v56 = vsel %vm55, %v53, %v54
    %s57 = vtos %v56
    %s58 = sand.u32 %s57, 1023
    %s59 = scalar_lea.smem [#allocation5], 0
    %60 = sst [smem:[%s59]] %s58
    %v61 = vstv %s58
    %vm62 = vcmp.eq.s32.totalorder %v28, %v61
    %v63 = vsel %vm62, 2147483648, %v33
    %v64 = vand.u32 %v63, 65535
    %v65 = vshra.s32 %v63, 16
    %v66 = vcvt.s32.f32 %v64
    %v67 = vcvt.s32.f32 %v65
    %68 = vmax.xlane.f32.xlu0 %v67
    %v69 = vpop.xlane.xlu0 %68
    %vm70 = vcmp.eq.f32.partialorder %v67, %v69
    %v71 = vsel %vm70, %v66, -inf
    %72 = vmax.xlane.f32.xlu0 %v71
    %v73 = vpop.xlane.xlu0 %72
    %v74 = vcvt.f32.s32 %v73
    %v75 = vcvt.f32.s32 %v69
    %v76 = vshll.u32 %v75, 16
    %v77 = vadd.s32 %v76, %v74
    %v78 = vrot.slane %v77, 4
    %vm79 = vcmp.gt.s32.totalorder %v77, %v78
    %v80 = vsel %vm79, %v77, %v78
    %v81 = vrot.slane %v80, 2
    %vm82 = vcmp.gt.s32.totalorder %v80, %v81
    %v83 = vsel %vm82, %v80, %v81
    %v84 = vrot.slane %v83, 1
    %vm85 = vcmp.gt.s32.totalorder %v83, %v84
    %v86 = vsel %vm85, %v83, %v84
    %s87 = vtos %v86
    %s88 = sand.u32 %s87, 1023
    %s89 = scalar_lea.smem [#allocation5], 1
    %90 = sst [smem:[%s89]] %s88
    %v91 = vstv %s88
    %vm92 = vcmp.eq.s32.totalorder %v28, %v91
    %v93 = vsel %vm92, 2147483648, %v63
    %v94 = vand.u32 %v93, 65535
    %v95 = vshra.s32 %v93, 16
    %v96 = vcvt.s32.f32 %v94
    %v97 = vcvt.s32.f32 %v95
    %98 = vmax.xlane.f32.xlu0 %v97
    %v99 = vpop.xlane.xlu0 %98
    %vm100 = vcmp.eq.f32.partialorder %v97, %v99
    %v101 = vsel %vm100, %v96, -inf
    %102 = vmax.xlane.f32.xlu0 %v101
    %v103 = vpop.xlane.xlu0 %102
    %v104 = vcvt.f32.s32 %v103
    %v105 = vcvt.f32.s32 %v99
    %v106 = vshll.u32 %v105, 16
    %v107 = vadd.s32 %v106, %v104
    %v108 = vrot.slane %v107, 4
    %vm109 = vcmp.gt.s32.totalorder %v107, %v108
    %v110 = vsel %vm109, %v107, %v108
    %v111 = vrot.slane %v110, 2
    %vm112 = vcmp.gt.s32.totalorder %v110, %v111
    %v113 = vsel %vm112, %v110, %v111
    %v114 = vrot.slane %v113, 1
    %vm115 = vcmp.gt.s32.totalorder %v113, %v114
    %v116 = vsel %vm115, %v113, %v114
    %s117 = vtos %v116
    %s118 = sand.u32 %s117, 1023
    %s119 = scalar_lea.smem [#allocation5], 2
    %120 = sst [smem:[%s119]] %s118
    %v121 = vstv %s118
    %vm122 = vcmp.eq.s32.totalorder %v28, %v121
    %v123 = vsel %vm122, 2147483648, %v93
    %v124 = vand.u32 %v123, 65535
    %v125 = vshra.s32 %v123, 16
    %v126 = vcvt.s32.f32 %v124
    %v127 = vcvt.s32.f32 %v125
    %128 = vmax.xlane.f32.xlu0 %v127
    %v129 = vpop.xlane.xlu0 %128
    %vm130 = vcmp.eq.f32.partialorder %v127, %v129
    %v131 = vsel %vm130, %v126, -inf
    %132 = vmax.xlane.f32.xlu0 %v131
    %v133 = vpop.xlane.xlu0 %132
    %v134 = vcvt.f32.s32 %v133
    %v135 = vcvt.f32.s32 %v129
    %v136 = vshll.u32 %v135, 16
    %v137 = vadd.s32 %v136, %v134
    %v138 = vrot.slane %v137, 4
    %vm139 = vcmp.gt.s32.totalorder %v137, %v138
    %v140 = vsel %vm139, %v137, %v138
    %v141 = vrot.slane %v140, 2
    %vm142 = vcmp.gt.s32.totalorder %v140, %v141
    %v143 = vsel %vm142, %v140, %v141
    %v144 = vrot.slane %v143, 1
    %vm145 = vcmp.gt.s32.totalorder %v143, %v144
    %v146 = vsel %vm145, %v143, %v144
    %s147 = vtos %v146
    %s148 = sand.u32 %s147, 1023
    %s149 = scalar_lea.smem [#allocation5], 3
    %150 = sst [smem:[%s149]] %s148
    %v151 = vstv %s148
    %vm152 = vcmp.eq.s32.totalorder %v28, %v151
    %v153 = vsel %vm152, 2147483648, %v123
    %v154 = vand.u32 %v153, 65535
    %v155 = vshra.s32 %v153, 16
    %v156 = vcvt.s32.f32 %v154
    %v157 = vcvt.s32.f32 %v155
    %158 = vmax.xlane.f32.xlu0 %v157
    %v159 = vpop.xlane.xlu0 %158
    %vm160 = vcmp.eq.f32.partialorder %v157, %v159
    %v161 = vsel %vm160, %v156, -inf
    %162 = vmax.xlane.f32.xlu0 %v161
    %v163 = vpop.xlane.xlu0 %162
    %v164 = vcvt.f32.s32 %v163
    %v165 = vcvt.f32.s32 %v159
    %v166 = vshll.u32 %v165, 16
    %v167 = vadd.s32 %v166, %v164
    %v168 = vrot.slane %v167, 4
    %vm169 = vcmp.gt.s32.totalorder %v167, %v168
    %v170 = vsel %vm169, %v167, %v168
    %v171 = vrot.slane %v170, 2
    %vm172 = vcmp.gt.s32.totalorder %v170, %v171
    %v173 = vsel %vm172, %v170, %v171
    %v174 = vrot.slane %v173, 1
    %vm175 = vcmp.gt.s32.totalorder %v173, %v174
    %v176 = vsel %vm175, %v173, %v174
    %s177 = vtos %v176
    %s178 = sand.u32 %s177, 1023
    %s179 = scalar_lea.smem [#allocation5], 4
    %180 = sst [smem:[%s179]] %s178
    %v181 = vstv %s178
    %vm182 = vcmp.eq.s32.totalorder %v28, %v181
    %v183 = vsel %vm182, 2147483648, %v153
    %v184 = vand.u32 %v183, 65535
    %v185 = vshra.s32 %v183, 16
    %v186 = vcvt.s32.f32 %v184
    %v187 = vcvt.s32.f32 %v185
    %188 = vmax.xlane.f32.xlu0 %v187
    %v189 = vpop.xlane.xlu0 %188
    %vm190 = vcmp.eq.f32.partialorder %v187, %v189
    %v191 = vsel %vm190, %v186, -inf
    %192 = vmax.xlane.f32.xlu0 %v191
    %v193 = vpop.xlane.xlu0 %192
    %v194 = vcvt.f32.s32 %v193
    %v195 = vcvt.f32.s32 %v189
    %v196 = vshll.u32 %v195, 16
    %v197 = vadd.s32 %v196, %v194
    %v198 = vrot.slane %v197, 4
    %vm199 = vcmp.gt.s32.totalorder %v197, %v198
    %v200 = vsel %vm199, %v197, %v198
    %v201 = vrot.slane %v200, 2
    %vm202 = vcmp.gt.s32.totalorder %v200, %v201
    %v203 = vsel %vm202, %v200, %v201
    %v204 = vrot.slane %v203, 1
    %vm205 = vcmp.gt.s32.totalorder %v203, %v204
    %v206 = vsel %vm205, %v203, %v204
    %s207 = vtos %v206
    %s208 = sand.u32 %s207, 1023
    %s209 = scalar_lea.smem [#allocation5], 5
    %210 = sst [smem:[%s209]] %s208
    %v211 = vstv %s208
    %vm212 = vcmp.eq.s32.totalorder %v28, %v211
    %v213 = vsel %vm212, 2147483648, %v183
    %v214 = vand.u32 %v213, 65535
    %v215 = vshra.s32 %v213, 16
    %v216 = vcvt.s32.f32 %v214
    %v217 = vcvt.s32.f32 %v215
    %218 = vmax.xlane.f32.xlu0 %v217
    %v219 = vpop.xlane.xlu0 %218
    %vm220 = vcmp.eq.f32.partialorder %v217, %v219
    %v221 = vsel %vm220, %v216, -inf
    %222 = vmax.xlane.f32.xlu0 %v221
    %v223 = vpop.xlane.xlu0 %222
    %v224 = vcvt.f32.s32 %v223
    %v225 = vcvt.f32.s32 %v219
    %v226 = vshll.u32 %v225, 16
    %v227 = vadd.s32 %v226, %v224
    %v228 = vrot.slane %v227, 4
    %vm229 = vcmp.gt.s32.totalorder %v227, %v228
    %v230 = vsel %vm229, %v227, %v228
    %v231 = vrot.slane %v230, 2
    %vm232 = vcmp.gt.s32.totalorder %v230, %v231
    %v233 = vsel %vm232, %v230, %v231
    %v234 = vrot.slane %v233, 1
    %vm235 = vcmp.gt.s32.totalorder %v233, %v234
    %v236 = vsel %vm235, %v233, %v234
    %s237 = vtos %v236
    %s238 = sand.u32 %s237, 1023
    %s239 = scalar_lea.smem [#allocation5], 6
    %240 = sst [smem:[%s239]] %s238
    // Predicated region
    $region10: #{tpu_custom_call.1} parent=1 // pred_check
      _
    $region11: #{tpu_custom_call.1} parent=1 // pred_check_branch
      %242 = sbr.rel (0) target = $region13
    $region12: #{tpu_custom_call.1} parent=1 // pred_region
      %244 = vsyncadd [#allocation4], 0
      %s246 = sshll.u32 %s1, 4
      %s247 = int_to_ptr.hbm [resolvable:$true] %s246
      %249 = dma.smem_to_hbm [#allocation5], 16, %s247, [#allocation4]
    $region13: #{tpu_custom_call.1} parent=1 // pred_fallthru
      _
    // Predicated region
    $region14: #{tpu_custom_call.1} parent=1 // pred_check
      _
    $region15: #{tpu_custom_call.1} parent=1 // pred_check_branch
      %251 = sbr.rel (0) target = $region17
    $region16: #{tpu_custom_call.1} parent=1 // pred_region
      %253 = dma.done [#allocation4], 16
    $region17: #{tpu_custom_call.1} parent=1 // pred_fallthru
      _
    %254 = sfence
    %255 = vsyncpa [#allocation3], 1
    %256 = vsyncpa [#allocation4], 1

</llo_original>
